<compile_context>
chip_gen: v6e
topology: v6e:2x2x1
jax: 0.10.0
libtpu: 0.0.40
codegen_flags: <defaults>
</compile_context>

<pallas_src>
import jax
import jax.numpy as jnp
from jax.experimental import pallas as pl
from jax.experimental.pallas import tpu as pltpu

LANE = 128
SUBLANE = 8


def _round_up(x, m):
    return ((x + m - 1) // m) * m


def _pad_to(a, shape):
    pads = [(0, t - s) for s, t in zip(a.shape, shape)]
    if all(p == (0, 0) for p in pads):
        return a
    return jnp.pad(a, pads)


# ----------------------------------------------------------------------------
# Kernel 1: one HeteroGraphConv layer.
#   grid = (M_tiles [parallel], R [arbitrary/reduction])
#   out tile (TILE_M, FOUT_PAD) is VMEM-resident across the relation axis and is
#   used directly as the accumulator.
# ----------------------------------------------------------------------------
def _rgcn_layer_kernel(a_ref, x_ref, invd_ref, w_ref, b_ref, o_ref):
    r = pl.program_id(1)

    @pl.when(r == 0)
    def _():
        o_ref[...] = jnp.zeros_like(o_ref)

    # Adjacency streamed as bf16 (exact 0/1); accumulate in f32.
    A = a_ref[0].astype(jnp.float32)                              # (TM, N_src)
    agg = jnp.dot(A, x_ref[...], preferred_element_type=jnp.float32)
    agg = agg * invd_ref[0]                                       # right-norm: (TM,1) bcast
    o_ref[...] += jnp.dot(agg, w_ref[0], preferred_element_type=jnp.float32)

    @pl.when(r == pl.num_programs(1) - 1)
    def _():
        o_ref[...] += b_ref[...]                                  # sum_r b_r, added once


def _layer_vmem_estimate(tm, n_src, fin_p, fout_p):
    n_src_l = _round_up(n_src, LANE)
    n_src_s = _round_up(n_src, SUBLANE)
    a_tile = tm * n_src_l * 2                  # bf16
    x_buf = n_src_s * fin_p * 4
    inv_buf = tm * LANE * 4
    w_buf = fin_p * fout_p * 4
    b_buf = SUBLANE * fout_p * 4
    o_buf = tm * fout_p * 4
    return 2 * (a_tile + x_buf + inv_buf + w_buf + b_buf + o_buf)  # double-buffered


def _layer_compiler_params(est_bytes):
    kw = dict(dimension_semantics=("parallel", "arbitrary"))
    if est_bytes > 30 * 1024 * 1024:
        # Stay below v7x's 64 MiB physical VMEM per TensorCore.
        kw["vmem_limit_bytes"] = min(est_bytes + (4 << 20), 60 * 1024 * 1024)
    return pltpu.CompilerParams(**kw)


def rgcn_layer(adj, x, w, b, *, tile_m=256):
    """adj: (R, N_dst, N_src) dense 0/1; x: (N_src, fin); w: (R, fin, fout); b: (R, fout)."""
    R, n_dst, n_src = adj.shape
    fin, fout = w.shape[1], w.shape[2]

    fin_p = _round_up(fin, LANE)
    fout_p = _round_up(fout, LANE)

    # Tile the destination-node (row) dimension.
    n_dst_p = _round_up(n_dst, SUBLANE)
    if n_dst_p > tile_m:
        n_dst_p = _round_up(n_dst_p, tile_m)
        tm = tile_m
    else:
        tm = n_dst_p
    m_tiles = n_dst_p // tm

    # Precompute exact f32 inverse in-degrees (DGL clamps degree at 1).
    deg = jnp.maximum(jnp.sum(adj.astype(jnp.float32), axis=2, keepdims=True), 1.0)
    inv_deg = _pad_to(1.0 / deg, (R, n_dst_p, 1))

    adj_b = _pad_to(adj.astype(jnp.float32), (R, n_dst_p, n_src)).astype(jnp.bfloat16)
    x_p = _pad_to(x.astype(jnp.float32), (n_src, fin_p))
    w_p = _pad_to(w.astype(jnp.float32), (R, fin_p, fout_p))
    b_tot = _pad_to(jnp.sum(b, axis=0, keepdims=True).astype(jnp.float32), (1, fout_p))

    out = pl.pallas_call(
        _rgcn_layer_kernel,
        out_shape=jax.ShapeDtypeStruct((n_dst_p, fout_p), jnp.float32),
        grid_spec=pltpu.PrefetchScalarGridSpec(
            num_scalar_prefetch=0,
            grid=(m_tiles, R),
            in_specs=[
                pl.BlockSpec((1, tm, n_src), lambda m, r: (r, m, 0)),      # A_r tile
                pl.BlockSpec((n_src, fin_p), lambda m, r: (0, 0)),         # x (shared)
                pl.BlockSpec((1, tm, 1), lambda m, r: (r, m, 0)),          # 1/deg tile
                pl.BlockSpec((1, fin_p, fout_p), lambda m, r: (r, 0, 0)),  # W_r
                pl.BlockSpec((1, fout_p), lambda m, r: (0, 0)),            # sum_r b_r
            ],
            out_specs=pl.BlockSpec((tm, fout_p), lambda m, r: (m, 0)),
        ),
        compiler_params=_layer_compiler_params(
            _layer_vmem_estimate(tm, n_src, fin_p, fout_p)),
    )(adj_b, x_p, inv_deg, w_p, b_tot)

    return out[:n_dst, :fout]


# ----------------------------------------------------------------------------
# Kernel 2: batched per-edge dot product (ScorePredictor hot path).
# Features are fed feature-major (F, E) so the reduction is over sublanes and the
# score output is a lane-dense (1, E_tile) slab (no masked (E,1) partial stores).
# ----------------------------------------------------------------------------
def _edge_dot_kernel(u_ref, v_ref, o_ref):
    o_ref[...] = jnp.sum(u_ref[...] * v_ref[...], axis=0, keepdims=True)


def edge_dot(u_feat, v_feat):
    """u_feat, v_feat: (E, F) endpoint features. Returns (E, 1) scores."""
    E, F = u_feat.shape
    e_pad = _round_up(max(E, 1), LANE)
    te = e_pad
    for cand in (1024, 512, 256, 128):
        if e_pad % cand == 0:
            te = cand
            break

    uT = _pad_to(u_feat.astype(jnp.float32).T, (F, e_pad))
    vT = _pad_to(v_feat.astype(jnp.float32).T, (F, e_pad))

    out = pl.pallas_call(
        _edge_dot_kernel,
        out_shape=jax.ShapeDtypeStruct((1, e_pad), jnp.float32),
        grid_spec=pltpu.PrefetchScalarGridSpec(
            num_scalar_prefetch=0,
            grid=(e_pad // te,),
            in_specs=[
                pl.BlockSpec((F, te), lambda i: (0, i)),
                pl.BlockSpec((F, te), lambda i: (0, i)),
            ],
            out_specs=pl.BlockSpec((1, te), lambda i: (0, i)),
        ),
        compiler_params=pltpu.CompilerParams(dimension_semantics=("parallel",)),
    )(uT, vT)

    return out[0, :E].reshape(E, 1)


# ----------------------------------------------------------------------------
# Model_bz forward.
# ----------------------------------------------------------------------------
def model_bz_forward(params, pos_edges, neg_edges, block_adjs, x):
    """params: w1[R,in,hid], b1[R,hid], w2[R,hid,out], b2[R,out].
    pos_edges/neg_edges: {etype: (u_idx[E], v_idx[E])}.
    block_adjs: (A1[R,N,N], A2[R,N,N]) dense adjacencies for the two MFG blocks."""
    A1, A2 = block_adjs
    h = rgcn_layer(A1, x, params["w1"], params["b1"])   # conv1
    h = rgcn_layer(A2, h, params["w2"], params["b2"])   # conv2

    # Batch every (graph, etype) edge set into ONE score kernel call.
    segs, u_list, v_list = [], [], []
    for which, edges in (("pos", pos_edges), ("neg", neg_edges)):
        for et, (u, v) in edges.items():
            segs.append((which, et, int(u.shape[0])))
            u_list.append(u)
            v_list.append(v)
    u_all = jnp.concatenate(u_list)
    v_all = jnp.concatenate(v_list)
    # Endpoint gather (pure indexing) stays in plain-JAX glue.
    scores = edge_dot(h[u_all], h[v_all])               # (E_total, 1)

    pos_score, neg_score = {}, {}
    off = 0
    for which, et, cnt in segs:
        seg = scores[off:off + cnt]
        off += cnt
        (pos_score if which == "pos" else neg_score)[et] = seg
    return pos_score, neg_score


# ----------------------------------------------------------------------------
# Pure-JAX reference (for correctness check only).
# ----------------------------------------------------------------------------
def _ref_layer(adj, x, w, b):
    outs = []
    for r in range(adj.shape[0]):
        deg = jnp.maximum(jnp.sum(adj[r], axis=1, keepdims=True), 1.0)
        outs.append((adj[r] @ x) / deg @ w[r] + b[r])
    return sum(outs)


def _ref_forward(params, pos_edges, neg_edges, block_adjs, x):
    A1, A2 = block_adjs
    h = _ref_layer(A1, x, params["w1"], params["b1"])
    h = _ref_layer(A2, h, params["w2"], params["b2"])

    def score(edges):
        return {et: jnp.sum(h[u] * h[v], axis=-1, keepdims=True)
                for et, (u, v) in edges.items()}

    return score(pos_edges), score(neg_edges)


if __name__ == "__main__":
    # Small, deterministic synthetic problem.
    N = 16            # number of nodes
    IN, HID, OUT = 8, 32, 16
    ETYPES = ["rel0", "rel1"]
    R = len(ETYPES)
    E = 12            # edges per etype in pos/neg graphs

    key = jax.random.PRNGKey(0)
    ks = jax.random.split(key, 12)

    x = jax.random.normal(ks[0], (N, IN), dtype=jnp.float32)

    A1 = jax.random.bernoulli(ks[1], 0.3, (R, N, N)).astype(jnp.float32)
    A2 = jax.random.bernoulli(ks[2], 0.3, (R, N, N)).astype(jnp.float32)

    params = {
        "w1": 0.1 * jax.random.normal(ks[3], (R, IN, HID), dtype=jnp.float32),
        "b1": 0.1 * jax.random.normal(ks[4], (R, HID), dtype=jnp.float32),
        "w2": 0.1 * jax.random.normal(ks[5], (R, HID, OUT), dtype=jnp.float32),
        "b2": 0.1 * jax.random.normal(ks[6], (R, OUT), dtype=jnp.float32),
    }

    def make_edges(k):
        ku, kv = jax.random.split(k)
        return (jax.random.randint(ku, (E,), 0, N),
                jax.random.randint(kv, (E,), 0, N))

    pos_edges = {et: make_edges(ks[7 + i]) for i, et in enumerate(ETYPES)}
    neg_edges = {et: make_edges(ks[9 + i]) for i, et in enumerate(ETYPES)}

    pos_score, neg_score = model_bz_forward(params, pos_edges, neg_edges, (A1, A2), x)
    jax.block_until_ready((pos_score, neg_score))

    ref_pos, ref_neg = _ref_forward(params, pos_edges, neg_edges, (A1, A2), x)
    for et in ETYPES:
        assert pos_score[et].shape == (E, 1) and neg_score[et].shape == (E, 1)
        assert jnp.allclose(pos_score[et], ref_pos[et], atol=1e-4, rtol=1e-4)
        assert jnp.allclose(neg_score[et], ref_neg[et], atol=1e-4, rtol=1e-4)

    print("KERNEL_OK")
</pallas_src>

<mosaic_0001>
module attributes {stable_mosaic.version = 11 : i64} {
  func.func @_rgcn_layer_kernel(%arg0: i32, %arg1: i32, %arg2: memref<1x16x16xbf16, #tpu.memory_space<vmem>>, %arg3: memref<16x128xf32, #tpu.memory_space<vmem>>, %arg4: memref<1x16x1xf32, #tpu.memory_space<vmem>>, %arg5: memref<1x128x128xf32, #tpu.memory_space<vmem>>, %arg6: memref<1x128xf32, #tpu.memory_space<vmem>>, %arg7: memref<16x128xf32, #tpu.memory_space<vmem>>) attributes {dimension_semantics = [#tpu.dimension_semantics<parallel>, #tpu.dimension_semantics<arbitrary>], iteration_bounds = array<i64: 1, 2>, scalar_prefetch = 0 : i64, scratch_operands = 0 : i64, tpu.core_type = #tpu.core_type<tc>, window_params = [{transform_indices = @transform_0, window_bounds = array<i64: 1, 16, 16>}, {pipeline_mode = #tpu.pipeline_mode<synchronous>, transform_indices = @transform_1, window_bounds = array<i64: 16, 128>}, {transform_indices = @transform_2, window_bounds = array<i64: 1, 16, 1>}, {transform_indices = @transform_3, window_bounds = array<i64: 1, 128, 128>}, {pipeline_mode = #tpu.pipeline_mode<synchronous>, transform_indices = @transform_4, window_bounds = array<i64: 1, 128>}, {transform_indices = @transform_5, window_bounds = array<i64: 16, 128>}]} {
    %c0_i32 = arith.constant 0 : i32
    %0 = arith.cmpi eq, %arg1, %c0_i32 : i32
    %1 = arith.extui %0 : i1 to i32
    %c0_i32_0 = arith.constant 0 : i32
    %2 = arith.cmpi ne, %1, %c0_i32_0 : i32
    scf.if %2 {
      %cst_17 = arith.constant 0.000000e+00 : f32
      %21 = vector.broadcast %cst_17 : f32 to vector<16x128xf32>
      %c0_18 = arith.constant 0 : index
      %c0_19 = arith.constant 0 : index
      %22 = vector.load %arg7[%c0_18, %c0_19] : memref<16x128xf32, #tpu.memory_space<vmem>>, vector<16x128xf32>
      tpu.vector_store %arg7[%c0_18, %c0_19], %21 {strides = array<i32>} : memref<16x128xf32, #tpu.memory_space<vmem>>, vector<16x128xf32>,
    } else {
    }
    %c0 = arith.constant 0 : index
    %c0_1 = arith.constant 0 : index
    %c0_2 = arith.constant 0 : index
    %3 = vector.load %arg2[%c0, %c0_1, %c0_2] : memref<1x16x16xbf16, #tpu.memory_space<vmem>>, vector<1x16x16xbf16>
    %4 = vector.shape_cast %3 : vector<1x16x16xbf16> to vector<16x16xbf16>
    %5 = arith.extf %4 : vector<16x16xbf16> to vector<16x16xf32>
    %c0_3 = arith.constant 0 : index
    %c0_4 = arith.constant 0 : index
    %6 = vector.load %arg3[%c0_3, %c0_4] : memref<16x128xf32, #tpu.memory_space<vmem>>, vector<16x128xf32>
    %cst = arith.constant dense<0.000000e+00> : vector<16x128xf32>
    %7 = tpu.matmul %5, %6, %cst {dimension_numbers = #tpu.dot_dimension_numbers<[1], [0], [0], [1], [0, 0, 1, 1], [], []>} : vector<16x16xf32>, vector<16x128xf32>, vector<16x128xf32> -> vector<16x128xf32>
    %c0_5 = arith.constant 0 : index
    %c0_6 = arith.constant 0 : index
    %c0_7 = arith.constant 0 : index
    %8 = vector.load %arg4[%c0_5, %c0_6, %c0_7] : memref<1x16x1xf32, #tpu.memory_space<vmem>>, vector<1x16x1xf32>
    %9 = vector.shape_cast %8 : vector<1x16x1xf32> to vector<16x1xf32>
    %10 = vector.broadcast %9 : vector<16x1xf32> to vector<16x128xf32>
    %11 = arith.mulf %7, %10 : vector<16x128xf32>
    %c0_8 = arith.constant 0 : index
    %c0_9 = arith.constant 0 : index
    %12 = vector.load %arg7[%c0_8, %c0_9] : memref<16x128xf32, #tpu.memory_space<vmem>>, vector<16x128xf32>
    %c0_10 = arith.constant 0 : index
    %c0_11 = arith.constant 0 : index
    %c0_12 = arith.constant 0 : index
    %13 = vector.load %arg5[%c0_10, %c0_11, %c0_12] : memref<1x128x128xf32, #tpu.memory_space<vmem>>, vector<1x128x128xf32>
    %14 = vector.shape_cast %13 : vector<1x128x128xf32> to vector<128x128xf32>
    %cst_13 = arith.constant dense<0.000000e+00> : vector<16x128xf32>
    %15 = tpu.matmul %11, %14, %cst_13 {dimension_numbers = #tpu.dot_dimension_numbers<[1], [0], [0], [1], [0, 0, 1, 1], [], []>} : vector<16x128xf32>, vector<128x128xf32>, vector<16x128xf32> -> vector<16x128xf32>
    %16 = arith.addf %12, %15 : vector<16x128xf32>
    %c0_14 = arith.constant 0 : index
    %c0_15 = arith.constant 0 : index
    %17 = vector.load %arg7[%c0_14, %c0_15] : memref<16x128xf32, #tpu.memory_space<vmem>>, vector<16x128xf32>
    tpu.vector_store %arg7[%c0_14, %c0_15], %16 {strides = array<i32>} : memref<16x128xf32, #tpu.memory_space<vmem>>, vector<16x128xf32>,
    %c1_i32 = arith.constant 1 : i32
    %18 = arith.cmpi eq, %arg1, %c1_i32 : i32
    %19 = arith.extui %18 : i1 to i32
    %c0_i32_16 = arith.constant 0 : i32
    %20 = arith.cmpi ne, %19, %c0_i32_16 : i32
    scf.if %20 {
      %c0_17 = arith.constant 0 : index
      %c0_18 = arith.constant 0 : index
      %21 = vector.load %arg7[%c0_17, %c0_18] : memref<16x128xf32, #tpu.memory_space<vmem>>, vector<16x128xf32>
      %c0_19 = arith.constant 0 : index
      %c0_20 = arith.constant 0 : index
      %22 = vector.load %arg6[%c0_19, %c0_20] : memref<1x128xf32, #tpu.memory_space<vmem>>, vector<1x128xf32>
      %23 = vector.broadcast %22 : vector<1x128xf32> to vector<16x128xf32>
      %24 = arith.addf %21, %23 : vector<16x128xf32>
      %c0_21 = arith.constant 0 : index
      %c0_22 = arith.constant 0 : index
      %25 = vector.load %arg7[%c0_21, %c0_22] : memref<16x128xf32, #tpu.memory_space<vmem>>, vector<16x128xf32>
      tpu.vector_store %arg7[%c0_21, %c0_22], %24 {strides = array<i32>} : memref<16x128xf32, #tpu.memory_space<vmem>>, vector<16x128xf32>,
    } else {
    }
    return
  }
  func.func @transform_0(%arg0: i32, %arg1: i32) -> (i32, i32, i32) {
    %c0_i32 = arith.constant 0 : i32
    %c0_i32_0 = arith.constant 0 : i32
    return %arg1, %arg0, %c0_i32 : i32, i32, i32
  }
  func.func @transform_1(%arg0: i32, %arg1: i32) -> (i32, i32) {
    %c0_i32 = arith.constant 0 : i32
    %c0_i32_0 = arith.constant 0 : i32
    %c0_i32_1 = arith.constant 0 : i32
    return %c0_i32, %c0_i32_0 : i32, i32
  }
  func.func @transform_2(%arg0: i32, %arg1: i32) -> (i32, i32, i32) {
    %c0_i32 = arith.constant 0 : i32
    %c0_i32_0 = arith.constant 0 : i32
    return %arg1, %arg0, %c0_i32 : i32, i32, i32
  }
  func.func @transform_3(%arg0: i32, %arg1: i32) -> (i32, i32, i32) {
    %c0_i32 = arith.constant 0 : i32
    %c0_i32_0 = arith.constant 0 : i32
    %c0_i32_1 = arith.constant 0 : i32
    return %arg1, %c0_i32, %c0_i32_0 : i32, i32, i32
  }
  func.func @transform_4(%arg0: i32, %arg1: i32) -> (i32, i32) {
    %c0_i32 = arith.constant 0 : i32
    %c0_i32_0 = arith.constant 0 : i32
    %c0_i32_1 = arith.constant 0 : i32
    return %c0_i32, %c0_i32_0 : i32, i32
  }
  func.func @transform_5(%arg0: i32, %arg1: i32) -> (i32, i32) {
    %c0_i32 = arith.constant 0 : i32
    %c0_i32_0 = arith.constant 0 : i32
    return %arg0, %c0_i32 : i32, i32
  }
}

</mosaic_0001>

<llo_original>
// kernel: tpu_custom_call.1
$region0: #{tpu_custom_call.1}
  #allocation0 [shape = 'u32[]', space=smem, size = 0x4, offset = 0x4, fixed_abs, tag = 'smem constant byte address 0x4 - core index']
  #allocation1 [shape = 'u32[144,128]{1,0:T(1,128)}', space=vmem, size = 0x12000, scoped, tag = 'internal scratch']
  %s0 = inlined_call_operand.vmem [shape: bf16[2,16,16], index: 0, kind: input, shape index: {}]
  %s1 = inlined_call_operand.vmem [shape: f32[16,128], index: 1, kind: input, shape index: {}]
  %s2 = inlined_call_operand.vmem [shape: f32[2,16,1], index: 2, kind: input, shape index: {}]
  %s3 = inlined_call_operand.hbm [shape: f32[2,128,128], index: 3, kind: input, shape index: {}]
  %s4 = inlined_call_operand.vmem [shape: f32[1,128], index: 4, kind: input, shape index: {}]
  %s5 = inlined_call_operand.hbm [shape: f32[16,128], index: 5, kind: output, shape index: {}]
  %s6 = sld [smem:[#allocation0]]
  $region65: #{tpu_custom_call.1} parent=0
    _
  %s8 = ssub.s32 1, %s6
  %s9 = scalar_select 0, %s8, %s6
  $region1: #{tpu_custom_call.1} parent=0
    #allocation2 [shape = 'u8[131072]{0}', space=vmem, size = 0x20000, scoped, tag = 'input window, operand 3']
    #allocation3 [shape = 's32[2]{0}', space=sflag, size = 0x8, scoped, tag = 'scoped memory for tpu_custom_call.1']
    #allocation4 [shape = 's32[2]{0}', space=sflag, size = 0x8, scoped, tag = 'scoped memory for tpu_custom_call.1']
    #allocation5 [shape = 'u8[8192]{0}', space=vmem, size = 0x2000, scoped, tag = 'output window, operand 0, single buffered']
    %10 = vsyncpa [#allocation3], 0
    %s11 = scalar_lea.sflag [#allocation3], 1
    %12 = vsyncpa %s11, 0
    %13 = vsyncpa [#allocation4], 0
    loop: start=0, step=1, limit=4
    $region2: #{tpu_custom_call.1} parent=1 // loop_pre_header
      _
    $region3: #{tpu_custom_call.1} parent=1 // loop_header
      %s15 = sphi 0, %s19
      %p16 = scmp.ge.s32.totalorder %s15, 4
      %s22 = sphi 0, %s34
      %s23 = sphi 0, %s30
      %s24 = sphi 0, %s22
      %s25 = sphi 0, %s23
      %s26 = sphi 0, %s24
      %s27 = sphi 0, %s25
      %s39 = sphi 0, %s41
      %s42 = sphi 0, %s39
      %s43 = sphi 0, %s42
      %s59 = sphi 0, %s43
      %s63 = sphi 0, %s63
      %s65 = sphi 0, %s63
      %s66 = sphi 0, %s65
      %s80 = sphi 0, %s66
      %s88 = sphi 0, %s90
      %s91 = sphi 0, %s88
      %s92 = sphi 0, %s91
      %s108 = sphi 0, %s92
      %s114 = sphi 0, %s116
      %s117 = sphi 0, %s114
      %s118 = sphi 0, %s117
      %s134 = sphi 0, %s118
      %s138 = sphi 0, %s138
      %s140 = sphi 0, %s138
      %s141 = sphi 0, %s140
      %s155 = sphi 0, %s141
      %s161 = sphi 0, %s163
      %s164 = sphi 0, %s161
      %s165 = sphi 0, %s164
      %s181 = sphi 0, %s165
    $region4: #{tpu_custom_call.1} parent=1 // loop_header_branch
      %18 = sbr.rel (%p16) target = $region8
    $region5: #{tpu_custom_call.1} parent=1 // loop_body
      %s20 = ssub.s32 %s15, 1
      %s21 = ssub.s32 %s15, 2
      %s28 = sadd.s32 1, %s23
      %p29 = scmp.ge.s32.totalorder %s28, 2
      %s30 = scalar_select %p29, 0, %s28
      %s31 = sadd.s32 1, %s22
      %s32 = scalar_select %p29, %s31, %s22
      %p33 = scmp.ge.s32.totalorder %s32, 1
      %s34 = scalar_select %p33, 0, %s32
      %s35 = ssub.s32 %s23, %s30
      %s36 = ssub.s32 %s22, %s34
      %s37 = sor.u32 %s35, %s36
      %p38 = scmp.eq.s32.totalorder %s37, 0
      %s40 = sadd.s32 %s39, 1
      %s41 = scalar_select %p38, %s39, %s40
      %p44 = pneg %p38
      %p45 = scmp.eq.s32.totalorder %s15, 1
      %p46 = por %p44, %p45
      %p47 = scmp.ne.s32.totalorder %s39, %s42
      %p48 = scmp.eq.s32.totalorder %s15, 0
      %p49 = por %p47, %p48
      %p50 = scmp.ne.s32.totalorder %s39, %s42
      %p51 = scmp.eq.s32.totalorder %s20, 1
      %p52 = por %p50, %p51
      %p53 = scmp.ne.s32.totalorder %s42, %s43
      %p54 = scmp.eq.s32.totalorder %s20, 0
      %p55 = por %p53, %p54
      %p56 = scmp.ne.s32.totalorder %s42, %s43
      %p57 = scmp.eq.s32.totalorder %s21, 1
      %p58 = por %p56, %p57
      %p60 = scmp.ne.s32.totalorder %s43, %s59
      %p61 = scmp.eq.s32.totalorder %s21, 0
      %p62 = por %p60, %p61
      %s64 = sadd.s32 %s63, 1
      %p67 = scmp.eq.s32.totalorder %s15, 1
      %p68 = scmp.ne.s32.totalorder %s63, %s65
      %p69 = scmp.eq.s32.totalorder %s15, 0
      %p70 = por %p68, %p69
      %p71 = scmp.ne.s32.totalorder %s63, %s65
      %p72 = scmp.eq.s32.totalorder %s20, 1
      %p73 = por %p71, %p72
      %p74 = scmp.ne.s32.totalorder %s65, %s66
      %p75 = scmp.eq.s32.totalorder %s20, 0
      %p76 = por %p74, %p75
      %p77 = scmp.ne.s32.totalorder %s65, %s66
      %p78 = scmp.eq.s32.totalorder %s21, 1
      %p79 = por %p77, %p78
      %p81 = scmp.ne.s32.totalorder %s66, %s80
      %p82 = scmp.eq.s32.totalorder %s21, 0
      %p83 = por %p81, %p82
      %s84 = ssub.s32 %s23, %s30
      %s85 = ssub.s32 %s22, %s34
      %s86 = sor.u32 %s84, %s85
      %p87 = scmp.eq.s32.totalorder %s86, 0
      %s89 = sadd.s32 %s88, 1
      %s90 = scalar_select %p87, %s88, %s89
      %p93 = pneg %p87
      %p94 = scmp.eq.s32.totalorder %s15, 1
      %p95 = por %p93, %p94
      %p96 = scmp.ne.s32.totalorder %s88, %s91
      %p97 = scmp.eq.s32.totalorder %s15, 0
      %p98 = por %p96, %p97
      %p99 = scmp.ne.s32.totalorder %s88, %s91
      %p100 = scmp.eq.s32.totalorder %s20, 1
      %p101 = por %p99, %p100
      %p102 = scmp.ne.s32.totalorder %s91, %s92
      %p103 = scmp.eq.s32.totalorder %s20, 0
      %p104 = por %p102, %p103
      %p105 = scmp.ne.s32.totalorder %s91, %s92
      %p106 = scmp.eq.s32.totalorder %s21, 1
      %p107 = por %p105, %p106
      %p109 = scmp.ne.s32.totalorder %s92, %s108
      %p110 = scmp.eq.s32.totalorder %s21, 0
      %p111 = por %p109, %p110
      %s112 = ssub.s32 %s23, %s30
      %p113 = scmp.eq.s32.totalorder %s112, 0
      %s115 = sadd.s32 %s114, 1
      %s116 = scalar_select %p113, %s114, %s115
      %p119 = pneg %p113
      %p120 = scmp.eq.s32.totalorder %s15, 1
      %p121 = por %p119, %p120
      %p122 = scmp.ne.s32.totalorder %s114, %s117
      %p123 = scmp.eq.s32.totalorder %s15, 0
      %p124 = por %p122, %p123
      %p125 = scmp.ne.s32.totalorder %s114, %s117
      %p126 = scmp.eq.s32.totalorder %s20, 1
      %p127 = por %p125, %p126
      %p128 = scmp.ne.s32.totalorder %s117, %s118
      %p129 = scmp.eq.s32.totalorder %s20, 0
      %p130 = por %p128, %p129
      %p131 = scmp.ne.s32.totalorder %s117, %s118
      %p132 = scmp.eq.s32.totalorder %s21, 1
      %p133 = por %p131, %p132
      %p135 = scmp.ne.s32.totalorder %s118, %s134
      %p136 = scmp.eq.s32.totalorder %s21, 0
      %p137 = por %p135, %p136
      %s139 = sadd.s32 %s138, 1
      %p142 = scmp.eq.s32.totalorder %s15, 1
      %p143 = scmp.ne.s32.totalorder %s138, %s140
      %p144 = scmp.eq.s32.totalorder %s15, 0
      %p145 = por %p143, %p144
      %p146 = scmp.ne.s32.totalorder %s138, %s140
      %p147 = scmp.eq.s32.totalorder %s20, 1
      %p148 = por %p146, %p147
      %p149 = scmp.ne.s32.totalorder %s140, %s141
      %p150 = scmp.eq.s32.totalorder %s20, 0
      %p151 = por %p149, %p150
      %p152 = scmp.ne.s32.totalorder %s140, %s141
      %p153 = scmp.eq.s32.totalorder %s21, 1
      %p154 = por %p152, %p153
      %p156 = scmp.ne.s32.totalorder %s141, %s155
      %p157 = scmp.eq.s32.totalorder %s21, 0
      %p158 = por %p156, %p157
      %s159 = ssub.s32 %s22, %s34
      %p160 = scmp.eq.s32.totalorder %s159, 0
      %s162 = sadd.s32 %s161, 1
      %s163 = scalar_select %p160, %s161, %s162
      %p166 = pneg %p160
      %p167 = scmp.eq.s32.totalorder %s15, 1
      %p168 = por %p166, %p167
      %p169 = scmp.ne.s32.totalorder %s161, %s164
      %p170 = scmp.eq.s32.totalorder %s15, 0
      %p171 = por %p169, %p170
      %p172 = scmp.ne.s32.totalorder %s161, %s164
      %p173 = scmp.eq.s32.totalorder %s20, 1
      %p174 = por %p172, %p173
      %p175 = scmp.ne.s32.totalorder %s164, %s165
      %p176 = scmp.eq.s32.totalorder %s20, 0
      %p177 = por %p175, %p176
      %p178 = scmp.ne.s32.totalorder %s164, %s165
      %p179 = scmp.eq.s32.totalorder %s21, 1
      %p180 = por %p178, %p179
      %p182 = scmp.ne.s32.totalorder %s165, %s181
      %p183 = scmp.eq.s32.totalorder %s21, 0
      %p184 = por %p182, %p183
      %p185 = scmp.le.s32.totalorder 1, %s15
      %p186 = scmp.lt.s32.totalorder %s15, 3
      %p187 = pnand %p185, %p186
      %p188 = pneg %p187
      // Predicated region
      $region9: #{tpu_custom_call.1} parent=5 // pred_check
        _
      $region10: #{tpu_custom_call.1} parent=5 // pred_check_branch
        %190 = sbr.rel (%p187) target = $region12
      $region11: #{tpu_custom_call.1} parent=5 // pred_region
        %s191 = ssub.s32 %s15, 1
        // Predicated region
        $region13: #{tpu_custom_call.1} parent=11 // pred_check
          %p192 = pneg %p76
        $region14: #{tpu_custom_call.1} parent=11 // pred_check_branch
          %194 = sbr.rel (%p192) target = $region16
        $region15: #{tpu_custom_call.1} parent=11 // pred_region
          _
        $region16: #{tpu_custom_call.1} parent=11 // pred_fallthru
          _
        // Predicated region
        $region17: #{tpu_custom_call.1} parent=11 // pred_check
          %p195 = pneg %p151
        $region18: #{tpu_custom_call.1} parent=11 // pred_check_branch
          %197 = sbr.rel (%p195) target = $region20
        $region19: #{tpu_custom_call.1} parent=11 // pred_region
          _
        $region20: #{tpu_custom_call.1} parent=11 // pred_fallthru
          _
      $region12: #{tpu_custom_call.1} parent=5 // pred_fallthru
        _
      %p198 = scmp.lt.s32.totalorder %s15, 2
      // Predicated region
      $region21: #{tpu_custom_call.1} parent=5 // pred_check
        %p199 = pneg %p198
      $region22: #{tpu_custom_call.1} parent=5 // pred_check_branch
        %201 = sbr.rel (%p199) target = $region24
      $region23: #{tpu_custom_call.1} parent=5 // pred_region
        // Predicated region
        $region25: #{tpu_custom_call.1} parent=23 // pred_check
          %p202 = pneg %p49
        $region26: #{tpu_custom_call.1} parent=23 // pred_check_branch
          %204 = sbr.rel (%p202) target = $region28
        $region27: #{tpu_custom_call.1} parent=23 // pred_region
          %s205 = smul.u32 2, %s22
          %p206 = scmp.lt.s32.totalorder %s23, 1
          %s207 = scalar_select %p206, %s23, 1
          %p208 = scmp.lt.s32.totalorder %s205, 1
          %s209 = scalar_select %p208, %s205, 1
          %s210 = smul.addr %s207, 2
          %s211 = sadd.s32 %s209, %s210
          %s212 = smul.addr %s211, 4
          %s213 = scalar_lea.vmem %s0, %s212
          %s214 = smul.u32 2, %s22
        $region28: #{tpu_custom_call.1} parent=23 // pred_fallthru
          _
        // Predicated region
        $region29: #{tpu_custom_call.1} parent=23 // pred_check
          %p215 = pneg %p98
        $region30: #{tpu_custom_call.1} parent=23 // pred_check_branch
          %217 = sbr.rel (%p215) target = $region32
        $region31: #{tpu_custom_call.1} parent=23 // pred_region
          %s218 = smul.u32 2, %s22
          %p219 = scmp.lt.s32.totalorder %s23, 1
          %s220 = scalar_select %p219, %s23, 1
          %p221 = scmp.lt.s32.totalorder %s218, 1
          %s222 = scalar_select %p221, %s218, 1
          %s223 = smul.addr %s220, 2
          %s224 = sadd.s32 %s222, %s223
          %s225 = smul.addr %s224, 8
          %s226 = scalar_lea.vmem %s2, %s225
          %s227 = smul.u32 2, %s22
        $region32: #{tpu_custom_call.1} parent=23 // pred_fallthru
          _
        // Predicated region
        $region33: #{tpu_custom_call.1} parent=23 // pred_check
          %p228 = pneg %p124
        $region34: #{tpu_custom_call.1} parent=23 // pred_check_branch
          %230 = sbr.rel (%p228) target = $region36
        $region35: #{tpu_custom_call.1} parent=23 // pred_region
          %s231 = sand.u32 %s114, 1
          %s232 = scalar_lea.sflag [#allocation3], %s231
          %s233 = sand.u32 %s114, 1
          %s234 = smul.addr %s233, 128
          %s235 = scalar_lea.vmem [#allocation2], %s234
          %s237 = ssub.s32 2048, 2048
          %238 = vsyncadd %s232, %s237
          %s239 = smul.addr %s23, 16
          %s240 = smul.addr %s239, 128
          %s241 = scalar_lea.hbm %s3, %s240
          %s242 = sshll.u32 %s235, 4
          %s243 = int_to_ptr.vmem [resolvable:$true] %s242
          %248 = dma.hbm_to_vmem [thread:$0]  %s241, 2048, %s243, %s232, 128, 128, 8
        $region36: #{tpu_custom_call.1} parent=23 // pred_fallthru
          _
      $region24: #{tpu_custom_call.1} parent=5 // pred_fallthru
        _
      %p249 = scmp.le.s32.totalorder 1, %s15
      %p250 = scmp.lt.s32.totalorder %s15, 3
      %p251 = pnand %p249, %p250
      %p252 = pneg %p251
      // Predicated region
      $region37: #{tpu_custom_call.1} parent=5 // pred_check
        _
      $region38: #{tpu_custom_call.1} parent=5 // pred_check_branch
        %254 = sbr.rel (%p251) target = $region40
      $region39: #{tpu_custom_call.1} parent=5 // pred_region
        %s255 = ssub.s32 %s15, 1
        %s256 = sand.u32 %s117, 1
        %s257 = scalar_lea.sflag [#allocation3], %s256
        %s258 = sand.u32 %s117, 1
        %s259 = smul.addr %s258, 128
        %s260 = scalar_lea.vmem [#allocation2], %s259
        // Predicated region
        $region41: #{tpu_custom_call.1} parent=39 // pred_check
          %p261 = pneg %p130
        $region42: #{tpu_custom_call.1} parent=39 // pred_check_branch
          %263 = sbr.rel (%p261) target = $region44
        $region43: #{tpu_custom_call.1} parent=39 // pred_region
          %264 = dma.done %s257, 2048
        $region44: #{tpu_custom_call.1} parent=39 // pred_fallthru
          _
        %s265 = smul.u32 2, %s24
        %p266 = scmp.lt.s32.totalorder %s25, 1
        %s267 = scalar_select %p266, %s25, 1
        %p268 = scmp.lt.s32.totalorder %s265, 1
        %s269 = scalar_select %p268, %s265, 1
        %s270 = smul.addr %s267, 2
        %s271 = sadd.s32 %s269, %s270
        %s272 = smul.addr %s271, 4
        %s273 = scalar_lea.vmem %s0, %s272
        %p274 = pneg %p55
        %p275 = pneg %p52
        %p276 = pneg %p76
        %p277 = pneg %p73
        %s278 = smul.u32 2, %s24
        %p279 = scmp.lt.s32.totalorder %s25, 1
        %s280 = scalar_select %p279, %s25, 1
        %p281 = scmp.lt.s32.totalorder %s278, 1
        %s282 = scalar_select %p281, %s278, 1
        %s283 = smul.addr %s280, 2
        %s284 = sadd.s32 %s282, %s283
        %s285 = smul.addr %s284, 8
        %s286 = scalar_lea.vmem %s2, %s285
        %p287 = pneg %p104
        %p288 = pneg %p101
        %s289 = sand.u32 %s117, 1
        %s290 = scalar_lea.sflag [#allocation3], %s289
        %s291 = sand.u32 %s117, 1
        %s292 = smul.addr %s291, 128
        %s293 = scalar_lea.vmem [#allocation2], %s292
        %p294 = pneg %p130
        %p295 = pneg %p127
        %p296 = pneg %p151
        %p297 = pneg %p148
        %p298 = pneg %p177
        %p299 = pneg %p174
        %s300 = smul.u32 2, %s24
        %p301 = scmp.lt.s32.totalorder %s25, 1
        %s302 = scalar_select %p301, %s25, 1
        %p303 = scmp.lt.s32.totalorder %s300, 1
        %s304 = scalar_select %p303, %s300, 1
        %s305 = smul.addr %s302, 2
        %s306 = sadd.s32 %s304, %s305
        %s307 = smul.addr %s306, 4
        %s308 = scalar_lea.vmem %s0, %s307
        %s309 = smul.u32 2, %s24
        %s310 = smul.u32 2, %s24
        %p311 = scmp.lt.s32.totalorder %s25, 1
        %s312 = scalar_select %p311, %s25, 1
        %p313 = scmp.lt.s32.totalorder %s310, 1
        %s314 = scalar_select %p313, %s310, 1
        %s315 = smul.addr %s312, 2
        %s316 = sadd.s32 %s314, %s315
        %s317 = smul.addr %s316, 8
        %s318 = scalar_lea.vmem %s2, %s317
        %s319 = smul.u32 2, %s24
        %s320 = smul.u32 2, %s24
        %p321 = scmp.eq.s32.totalorder %s25, 0
        // Predicated region
        $region45: #{tpu_custom_call.1} parent=39 // pred_check
          %p322 = pneg %p321
        $region46: #{tpu_custom_call.1} parent=39 // pred_check_branch
          %324 = sbr.rel (%p322) target = $region48
        $region47: #{tpu_custom_call.1} parent=39 // pred_region
          %325 = vst [vmem:[#allocation5] sm:$0xff] 0.0
          %326 = vst [vmem:[#allocation5 + $0x8] sm:$0xff] 0.0
        $region48: #{tpu_custom_call.1} parent=39 // pred_fallthru
          _
        %v327 = vld [vmem:[%s308] sm:$0xf]
        %v328 = vld [vmem:[%s308 + $0x4] sm:$0xf]
        %v329 = vunpack.c.l.bf16 %v327
        %v330 = vunpack.c.l.bf16 %v328
        %v331 = vld [vmem:[%s1] sm:$0xff]
        %v332 = vld [vmem:[%s1 + $0x8] sm:$0xff]
        %vm333 = vcmask 130048
        %v335 = vsel %vm333, %v329, 0
        %v338 = vsel %vm333, %v330, 0
        %340 = vmatprep.subr.mxu0 0.0
        %341 = vmatpush1.msra.mxu0 0.0
        %342 = vmatprep.subr.mxu0 0.0
        %343 = vmatpush1.msra.mxu0 0.0
        %344 = vmatprep.subr.mxu0 0.0
        %345 = vmatpush1.msra.mxu0 0.0
        %346 = vmatprep.subr.mxu0 0.0
        %347 = vmatpush1.msra.mxu0 0.0
        %348 = vmatprep.subr.mxu0 0.0
        %349 = vmatpush1.msra.mxu0 0.0
        %350 = vmatprep.subr.mxu0 0.0
        %351 = vmatpush1.msra.mxu0 0.0
        %352 = vmatprep.subr.mxu0 0.0
        %353 = vmatpush1.msra.mxu0 0.0
        %354 = vmatprep.subr.mxu0 0.0
        %355 = vmatpush1.msra.mxu0 0.0
        %356 = vmatprep.subr.mxu0 0.0
        %357 = vmatpush1.msra.mxu0 0.0
        %358 = vmatprep.subr.mxu0 0.0
        %359 = vmatpush1.msra.mxu0 0.0
        %360 = vmatprep.subr.mxu0 0.0
        %361 = vmatpush1.msra.mxu0 0.0
        %362 = vmatprep.subr.mxu0 0.0
        %363 = vmatpush1.msra.mxu0 0.0
        %364 = vmatprep.subr.mxu0 0.0
        %365 = vmatpush1.msra.mxu0 0.0
        %366 = vmatprep.subr.mxu0 0.0
        %367 = vmatpush1.msra.mxu0 0.0
        %368 = vmatprep.subr.mxu0 0.0
        %369 = vmatpush1.msra.mxu0 %v332
        %370 = vmatprep.subr.mxu0 0.0
        %371 = vmatpush1.msra.mxu0 %v331
        %372 = vmatprep.subr.mxu0 0.0
        %373 = vmatpush2.msra.mxu0 0.0
        %374 = vmatprep.subr.mxu0 0.0
        %375 = vmatpush2.msra.mxu0 0.0
        %376 = vmatprep.subr.mxu0 0.0
        %377 = vmatpush2.msra.mxu0 0.0
        %378 = vmatprep.subr.mxu0 0.0
        %379 = vmatpush2.msra.mxu0 0.0
        %380 = vmatprep.subr.mxu0 0.0
        %381 = vmatpush2.msra.mxu0 0.0
        %382 = vmatprep.subr.mxu0 0.0
        %383 = vmatpush2.msra.mxu0 0.0
        %384 = vmatprep.subr.mxu0 0.0
        %385 = vmatpush2.msra.mxu0 0.0
        %386 = vmatprep.subr.mxu0 0.0
        %387 = vmatpush2.msra.mxu0 0.0
        %388 = vmatprep.subr.mxu0 0.0
        %389 = vmatpush2.msra.mxu0 0.0
        %390 = vmatprep.subr.mxu0 0.0
        %391 = vmatpush2.msra.mxu0 0.0
        %392 = vmatprep.subr.mxu0 0.0
        %393 = vmatpush2.msra.mxu0 0.0
        %394 = vmatprep.subr.mxu0 0.0
        %395 = vmatpush2.msra.mxu0 0.0
        %396 = vmatprep.subr.mxu0 0.0
        %397 = vmatpush2.msra.mxu0 0.0
        %398 = vmatprep.subr.mxu0 0.0
        %399 = vmatpush2.msra.mxu0 0.0
        %400 = vmatprep.subr.mxu0 0.0
        %401 = vmatpush2.msra.mxu0 0.0
        %402 = vmatprep.subr.mxu0 0.0
        %403 = vmatpush2.msra.mxu0 0.0
        %404 = vmatprep.mubr.f32.mxu0 0.0
        %405 = vmatmul.mubr.f32.gmra.mxu0 %v335
        %v406 = vpop.f32.mrf.mxu0
        %v407 = vadd.f32 0.0, %v406
        %v408 = vpop.f32.mrf.mxu0
        %409 = vmatprep.mubr.f32.mxu0 0.0
        %410 = vmatmul.mubr.f32.gmra.mxu0 %v338
        %v411 = vpop.f32.mrf.mxu0
        %v412 = vadd.f32 0.0, %v411
        %v413 = vpop.f32.mrf.mxu0
        %414 = vdwg.mxu0
        %v415 = vld [vmem:[%s318] sm:$0xff]
        %v416 = vld [vmem:[%s318 + $0x8] sm:$0xff]
        %418 = vset.pattern.permute.xlu0 0
        %419 = vperm.xlu0 %418, %v415
        %v420 = vpop.permute.xlu0 %419
        %423 = vset.pattern.permute.xlu0 0
        %424 = vperm.xlu0 %423, %v416
        %v425 = vpop.permute.xlu0 %424
        %v427 = vmul.f32 %v407, %v420
        %v428 = vmul.f32 %v412, %v425
        %v429 = vld [vmem:[#allocation5] sm:$0xff]
        %v430 = vld [vmem:[#allocation5 + $0x8] sm:$0xff]
        %v431 = vld [vmem:[%s260] sm:$0xff]
        %v432 = vld [vmem:[%s260 + $0x8] sm:$0xff]
        %v433 = vld [vmem:[%s260 + $0x10] sm:$0xff]
        %v434 = vld [vmem:[%s260 + $0x18] sm:$0xff]
        %v435 = vld [vmem:[%s260 + $0x20] sm:$0xff]
        %v436 = vld [vmem:[%s260 + $0x28] sm:$0xff]
        %v437 = vld [vmem:[%s260 + $0x30] sm:$0xff]
        %v438 = vld [vmem:[%s260 + $0x38] sm:$0xff]
        %v439 = vld [vmem:[%s260 + $0x40] sm:$0xff]
        %v440 = vld [vmem:[%s260 + $0x48] sm:$0xff]
        %v441 = vld [vmem:[%s260 + $0x50] sm:$0xff]
        %v442 = vld [vmem:[%s260 + $0x58] sm:$0xff]
        %v443 = vld [vmem:[%s260 + $0x60] sm:$0xff]
        %v444 = vld [vmem:[%s260 + $0x68] sm:$0xff]
        %v445 = vld [vmem:[%s260 + $0x70] sm:$0xff]
        %v446 = vld [vmem:[%s260 + $0x78] sm:$0xff]
        %447 = vmatprep.subr.mxu0 0.0
        %448 = vmatpush1.msra.mxu0 %v446
        %449 = vmatprep.subr.mxu0 0.0
        %450 = vmatpush1.msra.mxu0 %v445
        %451 = vmatprep.subr.mxu0 0.0
        %452 = vmatpush1.msra.mxu0 %v444
        %453 = vmatprep.subr.mxu0 0.0
        %454 = vmatpush1.msra.mxu0 %v443
        %455 = vmatprep.subr.mxu0 0.0
        %456 = vmatpush1.msra.mxu0 %v442
        %457 = vmatprep.subr.mxu0 0.0
        %458 = vmatpush1.msra.mxu0 %v441
        %459 = vmatprep.subr.mxu0 0.0
        %460 = vmatpush1.msra.mxu0 %v440
        %461 = vmatprep.subr.mxu0 0.0
        %462 = vmatpush1.msra.mxu0 %v439
        %463 = vmatprep.subr.mxu0 0.0
        %464 = vmatpush1.msra.mxu0 %v438
        %465 = vmatprep.subr.mxu0 0.0
        %466 = vmatpush1.msra.mxu0 %v437
        %467 = vmatprep.subr.mxu0 0.0
        %468 = vmatpush1.msra.mxu0 %v436
        %469 = vmatprep.subr.mxu0 0.0
        %470 = vmatpush1.msra.mxu0 %v435
        %471 = vmatprep.subr.mxu0 0.0
        %472 = vmatpush1.msra.mxu0 %v434
        %473 = vmatprep.subr.mxu0 0.0
        %474 = vmatpush1.msra.mxu0 %v433
        %475 = vmatprep.subr.mxu0 0.0
        %476 = vmatpush1.msra.mxu0 %v432
        %477 = vmatprep.subr.mxu0 0.0
        %478 = vmatpush1.msra.mxu0 %v431
        %479 = vmatprep.subr.mxu0 0.0
        %480 = vmatpush2.msra.mxu0 0.0
        %481 = vmatprep.subr.mxu0 0.0
        %482 = vmatpush2.msra.mxu0 0.0
        %483 = vmatprep.subr.mxu0 0.0
        %484 = vmatpush2.msra.mxu0 0.0
        %485 = vmatprep.subr.mxu0 0.0
        %486 = vmatpush2.msra.mxu0 0.0
        %487 = vmatprep.subr.mxu0 0.0
        %488 = vmatpush2.msra.mxu0 0.0
        %489 = vmatprep.subr.mxu0 0.0
        %490 = vmatpush2.msra.mxu0 0.0
        %491 = vmatprep.subr.mxu0 0.0
        %492 = vmatpush2.msra.mxu0 0.0
        %493 = vmatprep.subr.mxu0 0.0
        %494 = vmatpush2.msra.mxu0 0.0
        %495 = vmatprep.subr.mxu0 0.0
        %496 = vmatpush2.msra.mxu0 0.0
        %497 = vmatprep.subr.mxu0 0.0
        %498 = vmatpush2.msra.mxu0 0.0
        %499 = vmatprep.subr.mxu0 0.0
        %500 = vmatpush2.msra.mxu0 0.0
        %501 = vmatprep.subr.mxu0 0.0
        %502 = vmatpush2.msra.mxu0 0.0
        %503 = vmatprep.subr.mxu0 0.0
        %504 = vmatpush2.msra.mxu0 0.0
        %505 = vmatprep.subr.mxu0 0.0
        %506 = vmatpush2.msra.mxu0 0.0
        %507 = vmatprep.subr.mxu0 0.0
        %508 = vmatpush2.msra.mxu0 0.0
        %509 = vmatprep.subr.mxu0 0.0
        %510 = vmatpush2.msra.mxu0 0.0
        %511 = vmatprep.mubr.f32.mxu0 0.0
        %512 = vmatmul.mubr.f32.gmra.mxu0 %v427
        %v513 = vpop.f32.mrf.mxu0
        %v514 = vadd.f32 0.0, %v513
        %v515 = vpop.f32.mrf.mxu0
        %516 = vmatprep.mubr.f32.mxu0 0.0
        %517 = vmatmul.mubr.f32.gmra.mxu0 %v428
        %v518 = vpop.f32.mrf.mxu0
        %v519 = vadd.f32 0.0, %v518
        %v520 = vpop.f32.mrf.mxu0
        %521 = vdwg.mxu0
        %v522 = vadd.f32 %v429, %v514
        %v523 = vadd.f32 %v430, %v519
        %524 = vst [vmem:[#allocation5] sm:$0xff] %v522
        %525 = vst [vmem:[#allocation5 + $0x8] sm:$0xff] %v523
        %p526 = scmp.eq.s32.totalorder %s25, 1
        // Predicated region
        $region49: #{tpu_custom_call.1} parent=39 // pred_check
          %p527 = pneg %p526
        $region50: #{tpu_custom_call.1} parent=39 // pred_check_branch
          %529 = sbr.rel (%p527) target = $region52
        $region51: #{tpu_custom_call.1} parent=39 // pred_region
          %v530 = vld [vmem:[#allocation5] sm:$0xff]
          %v531 = vld [vmem:[#allocation5 + $0x8] sm:$0xff]
          %v532 = vld [vmem:[%s4] sm:$0x1]
          %v534 = vlaneseq
          %v535 = vshrl.u32 %v534, 7
          %v536 = vsub.s32 0, %v535
          %v537 = vrot.slane %v532, %v536
          %v539 = vadd.f32 %v530, %v537
          %v540 = vadd.f32 %v531, %v537
          %541 = vst [vmem:[#allocation5] sm:$0xff] %v539
          %542 = vst [vmem:[#allocation5 + $0x8] sm:$0xff] %v540
        $region52: #{tpu_custom_call.1} parent=39 // pred_fallthru
          _
        // Predicated region
        $region53: #{tpu_custom_call.1} parent=39 // pred_check
          %p543 = pneg %p174
        $region54: #{tpu_custom_call.1} parent=39 // pred_check_branch
          %545 = sbr.rel (%p543) target = $region56
        $region55: #{tpu_custom_call.1} parent=39 // pred_region
          %s546 = smul.u32 2, %s24
          %s548 = ssub.s32 256, 256
          %549 = vsyncadd [#allocation4], %s548
          %s550 = smul.addr %s546, 128
          %s551 = scalar_lea.hbm %s5, %s550
          %s552 = sshll.u32 [#allocation5], 4
          %s553 = int_to_ptr.vmem [resolvable:$true] %s552
          %558 = dma.vmem_to_hbm [thread:$0]  %s553, 256, %s551, [#allocation4], 128, 128, 8
        $region56: #{tpu_custom_call.1} parent=39 // pred_fallthru
          _
        // Predicated region
        $region57: #{tpu_custom_call.1} parent=39 // pred_check
          %p559 = pneg %p174
        $region58: #{tpu_custom_call.1} parent=39 // pred_check_branch
          %561 = sbr.rel (%p559) target = $region60
        $region59: #{tpu_custom_call.1} parent=39 // pred_region
          %562 = dma.done [#allocation4], 256
        $region60: #{tpu_custom_call.1} parent=39 // pred_fallthru
          _
      $region40: #{tpu_custom_call.1} parent=5 // pred_fallthru
        _
      %p563 = scmp.le.s32.totalorder 2, %s15
      // Predicated region
      $region61: #{tpu_custom_call.1} parent=5 // pred_check
        %p564 = pneg %p563
      $region62: #{tpu_custom_call.1} parent=5 // pred_check_branch
        %566 = sbr.rel (%p564) target = $region64
      $region63: #{tpu_custom_call.1} parent=5 // pred_region
        %s567 = ssub.s32 %s15, 2
      $region64: #{tpu_custom_call.1} parent=5 // pred_fallthru
        _
    $region6: #{tpu_custom_call.1} parent=1 // loop_footer
      %s19 = sadd.s32 1, %s15
    $region7: #{tpu_custom_call.1} parent=1 // loop_footer_branch
      %14 = sbr.rel target = $region3
    $region8: #{tpu_custom_call.1} parent=1 // loop_exit
      _
    %568 = vsyncpa [#allocation3], 1
    %s569 = scalar_lea.sflag [#allocation3], 1
    %570 = vsyncpa %s569, 1
    %571 = vsyncpa [#allocation4], 1
    %s572 = scalar_lea.sflag [#allocation4], 1
    %573 = vsyncpa %s572, 1

</llo_original>
